<compile_context>
chip_gen: v7x
topology: tpu7x:2x2x1
jax: 0.10.0
libtpu: 0.0.40
codegen_flags: <defaults>
</compile_context>

<pallas_src>
import jax
import jax.numpy as jnp
from jax.experimental import pallas as pl
from jax.experimental.pallas import tpu as pltpu

# ----- small shapes consistent with the module -----
BATCH = 2
SEQ = 8            # T (== block_size, so the causal mask covers the full tril)
N_EMBD = 32        # C
HEAD_SIZE = 8      # HS
BLOCK_SIZE = 8


def head_kernel(x_ref, w_ref, o_ref):
    """Fused single-head causal self-attention.

    x_ref: (B*T, C)   float32   -- input activations
    w_ref: (C, 3*HS)  bfloat16  -- packed [Wk^T | Wq^T | Wv^T]
    o_ref: (B, T, HS) float32   -- attention output
    """
    B, T, HS = o_ref.shape

    # ---- packed QKV projection: one MXU matmul (bf16 in, f32 accumulate) ----
    x_bf = x_ref[...].astype(jnp.bfloat16)                     # (B*T, C)
    qkv = jnp.dot(x_bf, w_ref[...],
                  preferred_element_type=jnp.float32)          # (B*T, 3*HS)
    qkv = qkv.reshape(B, T, 3 * HS)                            # single in-kernel reshape
    k = qkv[:, :, 0 * HS:1 * HS]
    q = qkv[:, :, 1 * HS:2 * HS]
    v = qkv[:, :, 2 * HS:3 * HS]

    # ---- attention scores (batched over B), causal mask, f32 softmax ----
    wei = jnp.einsum('btd,bsd->bts',
                     q.astype(jnp.bfloat16), k.astype(jnp.bfloat16),
                     preferred_element_type=jnp.float32) * (HS ** -0.5)
    row = jax.lax.broadcasted_iota(jnp.int32, (T, T), 0)
    col = jax.lax.broadcasted_iota(jnp.int32, (T, T), 1)
    # diagonal is always unmasked -> row max stays finite, so -inf is safe
    # (matches torch masked_fill(-inf) exactly).
    wei = jnp.where((col <= row)[None, :, :], wei, -jnp.inf)
    wei = jnp.exp(wei - jnp.max(wei, axis=-1, keepdims=True))
    wei = wei * pl.reciprocal(jnp.sum(wei, axis=-1, keepdims=True), approx=True)
    # dropout(p=0.0) is the identity at inference -> omitted.

    # ---- weighted aggregation of values ----
    out = jnp.einsum('bts,bsd->btd',
                     wei.astype(jnp.bfloat16), v.astype(jnp.bfloat16),
                     preferred_element_type=jnp.float32)       # (B, T, HS)
    o_ref[...] = out.astype(o_ref.dtype)


_VMEM = pl.BlockSpec(memory_space=pltpu.MemorySpace.VMEM)


def head_forward(x, w_packed_bf16):
    """x: (B, T, C) float32; w_packed_bf16: (C, 3*HS) bfloat16 packed [K|Q|V]."""
    B, T, C = x.shape
    HS = w_packed_bf16.shape[1] // 3
    x2d = x.reshape(B * T, C)          # reshape once in the wrapper (free, XLA side)
    # Whole-array-in-VMEM, no grid: total footprint is ~3 KB, far below the
    # scoped-VMEM default on every generation. A tiled grid with
    # dimension_semantics=("parallel",...) only becomes worthwhile at real
    # model sizes (v7x: size tiles against 64 MiB VMEM).
    return pl.pallas_call(
        head_kernel,
        out_shape=jax.ShapeDtypeStruct((B, T, HS), x.dtype),
        in_specs=[_VMEM, _VMEM],
        out_specs=_VMEM,
    )(x2d, w_packed_bf16)


# ---------------------- pure-JAX reference (float32) ------------------------
def head_reference(x, wk, wq, wv):
    """Mirrors Head.forward with PyTorch-layout weights (HS, C)."""
    T = x.shape[-2]
    k = x @ wk.T
    q = x @ wq.T
    wei = jnp.einsum('btd,bsd->bts', q, k) * (k.shape[-1] ** -0.5)
    tril = jnp.tril(jnp.ones((T, T), jnp.float32))
    wei = jnp.where(tril[None, :, :] == 0, -jnp.inf, wei)
    wei = jax.nn.softmax(wei, axis=-1)
    v = x @ wv.T
    return wei @ v


if __name__ == "__main__":
    key = jax.random.PRNGKey(0)
    kx, kk, kq, kv = jax.random.split(key, 4)

    x = jax.random.normal(kx, (BATCH, SEQ, N_EMBD), jnp.float32)
    # nn.Linear(n_embd, head_size, bias=False) default init: U(-1/sqrt(C), 1/sqrt(C))
    bound = N_EMBD ** -0.5
    wk = jax.random.uniform(kk, (HEAD_SIZE, N_EMBD), jnp.float32, -bound, bound)
    wq = jax.random.uniform(kq, (HEAD_SIZE, N_EMBD), jnp.float32, -bound, bound)
    wv = jax.random.uniform(kv, (HEAD_SIZE, N_EMBD), jnp.float32, -bound, bound)

    # Pack [Wk^T | Wq^T | Wv^T] -> (C, 3*HS) once, stored in bf16 (MXU operand dtype).
    w_packed = jnp.concatenate([wk.T, wq.T, wv.T], axis=1).astype(jnp.bfloat16)

    out = head_forward(x, w_packed)
    jax.block_until_ready(out)

    assert out.shape == (BATCH, SEQ, HEAD_SIZE)
    assert bool(jnp.all(jnp.isfinite(out)))

    ref = head_reference(x, wk, wq, wv)
    assert bool(jnp.allclose(out, ref, atol=5e-2, rtol=5e-2)), (
        "max abs err = %f" % float(jnp.max(jnp.abs(out - ref))))

    print("KERNEL_OK")
</pallas_src>

<mosaic_0001>
module attributes {stable_mosaic.version = 11 : i64} {
  func.func @head_kernel(%arg0: memref<16x32xf32, #tpu.memory_space<vmem>>, %arg1: memref<32x24xbf16, #tpu.memory_space<vmem>>, %arg2: memref<2x8x8xf32, #tpu.memory_space<vmem>>) attributes {dimension_semantics = [], scalar_prefetch = 0 : i64, scratch_operands = 0 : i64, tpu.core_type = #tpu.core_type<tc>} {
    %c0 = arith.constant 0 : index
    %c0_0 = arith.constant 0 : index
    %0 = vector.load %arg0[%c0, %c0_0] : memref<16x32xf32, #tpu.memory_space<vmem>>, vector<16x32xf32>
    %1 = arith.truncf %0 : vector<16x32xf32> to vector<16x32xbf16>
    %c0_1 = arith.constant 0 : index
    %c0_2 = arith.constant 0 : index
    %2 = vector.load %arg1[%c0_1, %c0_2] : memref<32x24xbf16, #tpu.memory_space<vmem>>, vector<32x24xbf16>
    %cst = arith.constant dense<0.000000e+00> : vector<16x24xf32>
    %3 = tpu.matmul %1, %2, %cst {dimension_numbers = #tpu.dot_dimension_numbers<[1], [0], [0], [1], [0, 0, 1, 1], [], []>} : vector<16x32xbf16>, vector<32x24xbf16>, vector<16x24xf32> -> vector<16x24xf32>
    %4 = vector.shape_cast %3 : vector<16x24xf32> to vector<2x8x24xf32>
    %5 = vector.extract_strided_slice %4 {offsets = [0, 0, 0], sizes = [2, 8, 8], strides = [1, 1, 1]} : vector<2x8x24xf32> to vector<2x8x8xf32>
    %6 = vector.extract_strided_slice %4 {offsets = [0, 0, 8], sizes = [2, 8, 8], strides = [1, 1, 1]} : vector<2x8x24xf32> to vector<2x8x8xf32>
    %7 = vector.extract_strided_slice %4 {offsets = [0, 0, 16], sizes = [2, 8, 8], strides = [1, 1, 1]} : vector<2x8x24xf32> to vector<2x8x8xf32>
    %8 = arith.truncf %6 : vector<2x8x8xf32> to vector<2x8x8xbf16>
    %9 = arith.truncf %5 : vector<2x8x8xf32> to vector<2x8x8xbf16>
    "tpu.trace_start"() <{level = 10 : i32, message = "btd,bsd->bts"}> : () -> ()
    %cst_3 = arith.constant dense<0.000000e+00> : vector<2x8x8xf32>
    %10 = tpu.matmul %8, %9, %cst_3 {dimension_numbers = #tpu.dot_dimension_numbers<[2], [2], [1], [1], [0, 0, 0, 1, 1, 1], [0], [0]>} : vector<2x8x8xbf16>, vector<2x8x8xbf16>, vector<2x8x8xf32> -> vector<2x8x8xf32>
    "tpu.trace_stop"() : () -> ()
    %cst_4 = arith.constant 0.353553385 : f32
    %11 = vector.broadcast %cst_4 : f32 to vector<2x8x8xf32>
    %12 = arith.mulf %10, %11 : vector<2x8x8xf32>
    %13 = tpu.iota {dimensions = array<i32: 0>} : vector<8x8xi32>
    %14 = tpu.iota {dimensions = array<i32: 1>} : vector<8x8xi32>
    %15 = arith.cmpi sle, %14, %13 : vector<8x8xi32>
    %16 = vector.shape_cast %15 : vector<8x8xi1> to vector<1x8x8xi1>
    %cst_5 = arith.constant 0xFF800000 : f32
    %17 = vector.shape_cast %16 : vector<1x8x8xi1> to vector<1x8x8xi1>
    %18 = vector.broadcast %17 : vector<1x8x8xi1> to vector<2x8x8xi1>
    %19 = vector.broadcast %cst_5 : f32 to vector<2x8x8xf32>
    %20 = arith.select %18, %12, %19 : vector<2x8x8xi1>, vector<2x8x8xf32>
    %cst_6 = arith.constant dense<0xFF800000> : vector<2x8xf32>
    %21 = vector.multi_reduction <maximumf>, %20, %cst_6 [2] : vector<2x8x8xf32> to vector<2x8xf32>
    %22 = vector.shape_cast %21 : vector<2x8xf32> to vector<2x8x1xf32>
    %23 = vector.broadcast %22 : vector<2x8x1xf32> to vector<2x8x8xf32>
    %24 = arith.subf %20, %23 : vector<2x8x8xf32>
    %25 = math.exp %24 : vector<2x8x8xf32>
    %cst_7 = arith.constant dense<0.000000e+00> : vector<2x8xf32>
    %26 = vector.multi_reduction <add>, %25, %cst_7 [2] : vector<2x8x8xf32> to vector<2x8xf32>
    %27 = vector.shape_cast %26 : vector<2x8xf32> to vector<2x8x1xf32>
    %28 = tpu.reciprocal %27 {approx = true} : vector<2x8x1xf32> -> vector<2x8x1xf32>
    %29 = vector.broadcast %28 : vector<2x8x1xf32> to vector<2x8x8xf32>
    %30 = arith.mulf %25, %29 : vector<2x8x8xf32>
    %31 = arith.truncf %30 : vector<2x8x8xf32> to vector<2x8x8xbf16>
    %32 = arith.truncf %7 : vector<2x8x8xf32> to vector<2x8x8xbf16>
    "tpu.trace_start"() <{level = 10 : i32, message = "bts,bsd->btd"}> : () -> ()
    %cst_8 = arith.constant dense<0.000000e+00> : vector<2x8x8xf32>
    %33 = tpu.matmul %31, %32, %cst_8 {dimension_numbers = #tpu.dot_dimension_numbers<[2], [1], [1], [2], [0, 0, 0, 1, 1, 2], [0], [0]>} : vector<2x8x8xbf16>, vector<2x8x8xbf16>, vector<2x8x8xf32> -> vector<2x8x8xf32>
    "tpu.trace_stop"() : () -> ()
    %c0_9 = arith.constant 0 : index
    %c0_10 = arith.constant 0 : index
    %c0_11 = arith.constant 0 : index
    %34 = vector.load %arg2[%c0_9, %c0_10, %c0_11] : memref<2x8x8xf32, #tpu.memory_space<vmem>>, vector<2x8x8xf32>
    tpu.vector_store %arg2[%c0_9, %c0_10, %c0_11], %33 {strides = array<i32>} : memref<2x8x8xf32, #tpu.memory_space<vmem>>, vector<2x8x8xf32>,
    return
  }
}

</mosaic_0001>

<llo_original>
// kernel: tpu_custom_call.1
$region0: #{tpu_custom_call.1}
  #allocation0 [shape = 'u32[]', space=smem, size = 0x4, offset = 0x4, fixed_abs, tag = 'smem constant byte address 0x4 - core index']
  #allocation1 [shape = 'u32[144,128]{1,0:T(1,128)}', space=vmem, size = 0x12000, scoped, tag = 'internal scratch']
  %s0 = inlined_call_operand.vmem [shape: f32[16,32], index: 0, kind: input, shape index: {}]
  %s1 = inlined_call_operand.vmem [shape: bf16[32,24], index: 1, kind: input, shape index: {}]
  %s2 = inlined_call_operand.hbm [shape: f32[2,8,8], index: 2, kind: output, shape index: {}]
  %s3 = sld [smem:[#allocation0]]
  $region18: #{tpu_custom_call.1} parent=0
    _
  %s5 = ssub.s32 1, %s3
  %s6 = scalar_select 0, %s5, %s3
  $region1: #{tpu_custom_call.1} parent=0
    #allocation2 [shape = 'u8[8192]{0}', space=vmem, size = 0x2000, scoped, tag = 'output window, operand 0, single buffered']
    #allocation3 [shape = 's32[1]{0}', space=sflag, size = 0x4, scoped, tag = 'scoped memory for tpu_custom_call.1']
    %7 = vsyncpa [#allocation3], 0
    // Predicated region
    $region2: #{tpu_custom_call.1} parent=1 // pred_check
      _
    $region3: #{tpu_custom_call.1} parent=1 // pred_check_branch
      %9 = sbr.rel (0) target = $region5
    $region4: #{tpu_custom_call.1} parent=1 // pred_region
      _
    $region5: #{tpu_custom_call.1} parent=1 // pred_fallthru
      _
    // Predicated region
    $region6: #{tpu_custom_call.1} parent=1 // pred_check
      _
    $region7: #{tpu_custom_call.1} parent=1 // pred_check_branch
      %11 = sbr.rel (0) target = $region9
    $region8: #{tpu_custom_call.1} parent=1 // pred_region
      _
    $region9: #{tpu_custom_call.1} parent=1 // pred_fallthru
      _
    %v13 = vld [vmem:[%s0] sm:$0xff]
    %v14 = vld [vmem:[%s0 + $0x8] sm:$0xff]
    %v15 = vpack.c.bf16 %v14, %v13
    %v16 = vld [vmem:[%s1] sm:$0xf]
    %v17 = vld [vmem:[%s1 + $0x4] sm:$0xf]
    %v18 = vld [vmem:[%s1 + $0x8] sm:$0xf]
    %v19 = vld [vmem:[%s1 + $0xc] sm:$0xf]
    %v24 = vunpack.c.l.b16 %v16
    %v25 = vunpack.c.l.b16 %v17
    %v26 = vunpack.c.l.b16 %v18
    %v27 = vunpack.c.l.b16 %v19
    %v28 = vpack.c.b16 %v25, %v24
    %v29 = vpack.c.b16 %v27, %v26
    %vm32 = vcmask 261120
    %v34 = vsel %vm32, %v15, 0
    %36 = vmatprep.subr.bf16.mxu0 0
    %37 = vmatpush1.bf16.msra.mxu0 %v28
    %38 = vmatprep.subr.bf16.mxu0 0
    %39 = vmatpush1.bf16.msra.mxu0 %v29
    %40 = vmatprep.subr.bf16.mxu0 0
    %41 = vmatpush1.bf16.msra.mxu0 0
    %42 = vmatprep.subr.bf16.mxu0 0
    %43 = vmatpush1.bf16.msra.mxu0 0
    %44 = vmatprep.subr.bf16.mxu0 0
    %45 = vmatpush1.bf16.msra.mxu0 0
    %46 = vmatprep.subr.bf16.mxu0 0
    %47 = vmatpush1.bf16.msra.mxu0 0
    %48 = vmatprep.subr.bf16.mxu0 0
    %49 = vmatpush1.bf16.msra.mxu0 0
    %50 = vmatprep.subr.bf16.mxu0 0
    %51 = vmatpush1.bf16.msra.mxu0 0
    %52 = vmatprep.subr.bf16.mxu0 0
    %53 = vmatpush1.bf16.msra.mxu0 0
    %54 = vmatprep.subr.bf16.mxu0 0
    %55 = vmatpush1.bf16.msra.mxu0 0
    %56 = vmatprep.subr.bf16.mxu0 0
    %57 = vmatpush1.bf16.msra.mxu0 0
    %58 = vmatprep.subr.bf16.mxu0 0
    %59 = vmatpush1.bf16.msra.mxu0 0
    %60 = vmatprep.subr.bf16.mxu0 0
    %61 = vmatpush1.bf16.msra.mxu0 0
    %62 = vmatprep.subr.bf16.mxu0 0
    %63 = vmatpush1.bf16.msra.mxu0 0
    %64 = vmatprep.subr.bf16.mxu0 0
    %65 = vmatpush1.bf16.msra.mxu0 0
    %66 = vmatprep.subr.bf16.mxu0 0
    %67 = vmatpush1.bf16.msra.mxu0 0
    %68 = vmatprep.mubr.bf16.mxu0 0
    %69 = vmatmul.mubr.bf16.gmra.mrb[0].mxu0 %v34
    %v70 = vpop.f32.mrb[0].mxu0
    %v71 = vadd.f32 0.0, %v70
    %v72 = vpop.f32.mrb[0].mxu0
    %v73 = vpop.f32.mrb[0].mxu0
    %v74 = vadd.f32 0.0, %v73
    %v75 = vpop.f32.mrb[0].mxu0
    %76 = vdwg.mxu0
    %v77 = vpack.c.bf16 %v71, %v71
    %v78 = vpack.c.bf16 %v74, %v74
    %80 = vrot.lane.b32.xlu0 %v77, 120
    %v81 = vpop.permute.xlu0 %80
    %vm82 = vcmask 64512
    %v84 = vsel %vm82, %v81, 0
    %v87 = vsel %vm82, %v77, 0
    %89 = vmatprep.subr.bf16.mxu0 0
    %90 = vmatpush1.bf16.xpose.msra.mxu0 %v87
    %91 = vmatprep.subr.bf16.mxu0 0
    %92 = vmatpush1.bf16.xpose.msra.mxu0 0
    %93 = vmatprep.subr.bf16.mxu0 0
    %94 = vmatpush1.bf16.xpose.msra.mxu0 0
    %95 = vmatprep.subr.bf16.mxu0 0
    %96 = vmatpush1.bf16.xpose.msra.mxu0 0
    %97 = vmatprep.subr.bf16.mxu0 0
    %98 = vmatpush1.bf16.xpose.msra.mxu0 0
    %99 = vmatprep.subr.bf16.mxu0 0
    %100 = vmatpush1.bf16.xpose.msra.mxu0 0
    %101 = vmatprep.subr.bf16.mxu0 0
    %102 = vmatpush1.bf16.xpose.msra.mxu0 0
    %103 = vmatprep.subr.bf16.mxu0 0
    %104 = vmatpush1.bf16.xpose.msra.mxu0 0
    %105 = vmatprep.subr.bf16.mxu0 0
    %106 = vmatpush1.bf16.xpose.msra.mxu0 0
    %107 = vmatprep.subr.bf16.mxu0 0
    %108 = vmatpush1.bf16.xpose.msra.mxu0 0
    %109 = vmatprep.subr.bf16.mxu0 0
    %110 = vmatpush1.bf16.xpose.msra.mxu0 0
    %111 = vmatprep.subr.bf16.mxu0 0
    %112 = vmatpush1.bf16.xpose.msra.mxu0 0
    %113 = vmatprep.subr.bf16.mxu0 0
    %114 = vmatpush1.bf16.xpose.msra.mxu0 0
    %115 = vmatprep.subr.bf16.mxu0 0
    %116 = vmatpush1.bf16.xpose.msra.mxu0 0
    %117 = vmatprep.subr.bf16.mxu0 0
    %118 = vmatpush1.bf16.xpose.msra.mxu0 0
    %119 = vmatprep.subr.bf16.mxu0 0
    %120 = vmatpush1.bf16.xpose.msra.mxu0 0
    %121 = vmatprep.mubr.bf16.mxu0 0
    %122 = vmatmul.mubr.bf16.gmra.mrb[0].mxu0 %v84
    %v123 = vpop.f32.mrb[0].mxu0
    %v124 = vadd.f32 0.0, %v123
    %v125 = vpop.f32.mrb[0].mxu0
    %v126 = vpop.f32.mrb[0].mxu0
    %v127 = vpop.f32.mrb[0].mxu0
    %128 = vdwg.mxu0
    %130 = vrot.lane.b32.xlu0 %v78, 120
    %v131 = vpop.permute.xlu0 %130
    %v133 = vsel %vm82, %v131, 0
    %v136 = vsel %vm82, %v78, 0
    %138 = vmatprep.subr.bf16.mxu0 0
    %139 = vmatpush1.bf16.xpose.msra.mxu0 %v136
    %140 = vmatprep.subr.bf16.mxu0 0
    %141 = vmatpush1.bf16.xpose.msra.mxu0 0
    %142 = vmatprep.subr.bf16.mxu0 0
    %143 = vmatpush1.bf16.xpose.msra.mxu0 0
    %144 = vmatprep.subr.bf16.mxu0 0
    %145 = vmatpush1.bf16.xpose.msra.mxu0 0
    %146 = vmatprep.subr.bf16.mxu0 0
    %147 = vmatpush1.bf16.xpose.msra.mxu0 0
    %148 = vmatprep.subr.bf16.mxu0 0
    %149 = vmatpush1.bf16.xpose.msra.mxu0 0
    %150 = vmatprep.subr.bf16.mxu0 0
    %151 = vmatpush1.bf16.xpose.msra.mxu0 0
    %152 = vmatprep.subr.bf16.mxu0 0
    %153 = vmatpush1.bf16.xpose.msra.mxu0 0
    %154 = vmatprep.subr.bf16.mxu0 0
    %155 = vmatpush1.bf16.xpose.msra.mxu0 0
    %156 = vmatprep.subr.bf16.mxu0 0
    %157 = vmatpush1.bf16.xpose.msra.mxu0 0
    %158 = vmatprep.subr.bf16.mxu0 0
    %159 = vmatpush1.bf16.xpose.msra.mxu0 0
    %160 = vmatprep.subr.bf16.mxu0 0
    %161 = vmatpush1.bf16.xpose.msra.mxu0 0
    %162 = vmatprep.subr.bf16.mxu0 0
    %163 = vmatpush1.bf16.xpose.msra.mxu0 0
    %164 = vmatprep.subr.bf16.mxu0 0
    %165 = vmatpush1.bf16.xpose.msra.mxu0 0
    %166 = vmatprep.subr.bf16.mxu0 0
    %167 = vmatpush1.bf16.xpose.msra.mxu0 0
    %168 = vmatprep.subr.bf16.mxu0 0
    %169 = vmatpush1.bf16.xpose.msra.mxu0 0
    %170 = vmatprep.mubr.bf16.mxu0 0
    %171 = vmatmul.mubr.bf16.gmra.mrb[0].mxu0 %v133
    %v172 = vpop.f32.mrb[0].mxu0
    %v173 = vadd.f32 0.0, %v172
    %v174 = vpop.f32.mrb[0].mxu0
    %v175 = vpop.f32.mrb[0].mxu0
    %v176 = vpop.f32.mrb[0].mxu0
    %177 = vdwg.mxu0
    %v178 = vmul.f32 %v124, 0.35355338
    %v179 = vmul.f32 %v173, 0.35355338
    %v180 = vlaneseq
    %v181 = vshrl.u32 %v180, 7
    %v182 = vlaneseq
    %v183 = vand.u32 %v182, 127
    %vm184 = vcmp.le.s32.totalorder %v183, %v181
    %v185 = vsel %vm184, 1, 0
    %vm186 = vcmp.eq.s32.totalorder %v185, 1
    %v187 = vsel %vm186, %v178, -inf
    %v188 = vsel %vm186, %v179, -inf
    %v189 = vsel %vm82, %v187, -inf
    %190 = vmax.xlane.f32.xlu0 %v189
    %v191 = vpop.xlane.xlu0 %190
    %v192 = vsel %vm82, %v188, -inf
    %193 = vmax.xlane.f32.xlu0 %v192
    %v194 = vpop.xlane.xlu0 %193
    %v195 = vsub.f32 %v187, %v191
    %v196 = vsub.f32 %v188, %v194
    %v197 = vmul.f32 %v195, 1.442695
    %v198 = vpow.pop %v197
    %v199 = vmul.f32 %v196, 1.442695
    %v200 = vpow.pop %v199
    %v201 = vsel %vm82, %v198, 0.0
    %202 = vadd.xlane.f32.xlu0 %v201
    %v203 = vpop.xlane.xlu0 %202
    %v204 = vsel %vm82, %v200, 0.0
    %205 = vadd.xlane.f32.xlu0 %v204
    %v206 = vpop.xlane.xlu0 %205
    %v207 = vrcp.pop %v203
    %v208 = vrcp.pop %v206
    %v209 = vmul.f32 %v198, %v207
    %v210 = vmul.f32 %v200, %v208
    %v211 = vpack.c.bf16 %v209, %v209
    %v212 = vpack.c.bf16 %v210, %v210
    %213 = vrot.lane.b32.xlu0 %v77, 112
    %v214 = vpop.permute.xlu0 %213
    %v216 = vsel %vm82, %v211, 0
    %vm218 = vcmask 1043456
    %v220 = vsel %vm218, %v214, 0
    %222 = vmatprep.subr.bf16.mxu0 0
    %223 = vmatpush1.bf16.msra.mxu0 %v220
    %224 = vmatprep.subr.bf16.mxu0 0
    %225 = vmatpush1.bf16.msra.mxu0 0
    %226 = vmatprep.subr.bf16.mxu0 0
    %227 = vmatpush1.bf16.msra.mxu0 0
    %228 = vmatprep.subr.bf16.mxu0 0
    %229 = vmatpush1.bf16.msra.mxu0 0
    %230 = vmatprep.subr.bf16.mxu0 0
    %231 = vmatpush1.bf16.msra.mxu0 0
    %232 = vmatprep.subr.bf16.mxu0 0
    %233 = vmatpush1.bf16.msra.mxu0 0
    %234 = vmatprep.subr.bf16.mxu0 0
    %235 = vmatpush1.bf16.msra.mxu0 0
    %236 = vmatprep.subr.bf16.mxu0 0
    %237 = vmatpush1.bf16.msra.mxu0 0
    %238 = vmatprep.subr.bf16.mxu0 0
    %239 = vmatpush1.bf16.msra.mxu0 0
    %240 = vmatprep.subr.bf16.mxu0 0
    %241 = vmatpush1.bf16.msra.mxu0 0
    %242 = vmatprep.subr.bf16.mxu0 0
    %243 = vmatpush1.bf16.msra.mxu0 0
    %244 = vmatprep.subr.bf16.mxu0 0
    %245 = vmatpush1.bf16.msra.mxu0 0
    %246 = vmatprep.subr.bf16.mxu0 0
    %247 = vmatpush1.bf16.msra.mxu0 0
    %248 = vmatprep.subr.bf16.mxu0 0
    %249 = vmatpush1.bf16.msra.mxu0 0
    %250 = vmatprep.subr.bf16.mxu0 0
    %251 = vmatpush1.bf16.msra.mxu0 0
    %252 = vmatprep.subr.bf16.mxu0 0
    %253 = vmatpush1.bf16.msra.mxu0 0
    %254 = vmatprep.mubr.bf16.mxu0 0
    %255 = vmatmul.mubr.bf16.gmra.mrb[0].mxu0 %v216
    %v256 = vpop.f32.mrb[0].mxu0
    %v257 = vadd.f32 0.0, %v256
    %v258 = vpop.f32.mrb[0].mxu0
    %v259 = vpop.f32.mrb[0].mxu0
    %v260 = vpop.f32.mrb[0].mxu0
    %261 = vdwg.mxu0
    %262 = vrot.lane.b32.xlu0 %v78, 112
    %v263 = vpop.permute.xlu0 %262
    %v265 = vsel %vm82, %v212, 0
    %v268 = vsel %vm218, %v263, 0
    %270 = vmatprep.subr.bf16.mxu0 0
    %271 = vmatpush1.bf16.msra.mxu0 %v268
    %272 = vmatprep.subr.bf16.mxu0 0
    %273 = vmatpush1.bf16.msra.mxu0 0
    %274 = vmatprep.subr.bf16.mxu0 0
    %275 = vmatpush1.bf16.msra.mxu0 0
    %276 = vmatprep.subr.bf16.mxu0 0
    %277 = vmatpush1.bf16.msra.mxu0 0
    %278 = vmatprep.subr.bf16.mxu0 0
    %279 = vmatpush1.bf16.msra.mxu0 0
    %280 = vmatprep.subr.bf16.mxu0 0
    %281 = vmatpush1.bf16.msra.mxu0 0
    %282 = vmatprep.subr.bf16.mxu0 0
    %283 = vmatpush1.bf16.msra.mxu0 0
    %284 = vmatprep.subr.bf16.mxu0 0
    %285 = vmatpush1.bf16.msra.mxu0 0
    %286 = vmatprep.subr.bf16.mxu0 0
    %287 = vmatpush1.bf16.msra.mxu0 0
    %288 = vmatprep.subr.bf16.mxu0 0
    %289 = vmatpush1.bf16.msra.mxu0 0
    %290 = vmatprep.subr.bf16.mxu0 0
    %291 = vmatpush1.bf16.msra.mxu0 0
    %292 = vmatprep.subr.bf16.mxu0 0
    %293 = vmatpush1.bf16.msra.mxu0 0
    %294 = vmatprep.subr.bf16.mxu0 0
    %295 = vmatpush1.bf16.msra.mxu0 0
    %296 = vmatprep.subr.bf16.mxu0 0
    %297 = vmatpush1.bf16.msra.mxu0 0
    %298 = vmatprep.subr.bf16.mxu0 0
    %299 = vmatpush1.bf16.msra.mxu0 0
    %300 = vmatprep.subr.bf16.mxu0 0
    %301 = vmatpush1.bf16.msra.mxu0 0
    %302 = vmatprep.mubr.bf16.mxu0 0
    %303 = vmatmul.mubr.bf16.gmra.mrb[0].mxu0 %v265
    %v304 = vpop.f32.mrb[0].mxu0
    %v305 = vadd.f32 0.0, %v304
    %v306 = vpop.f32.mrb[0].mxu0
    %v307 = vpop.f32.mrb[0].mxu0
    %v308 = vpop.f32.mrb[0].mxu0
    %309 = vdwg.mxu0
    %310 = vst.msk [vmem:[#allocation2] sm:$0xff] %vm82, %v257
    %311 = vst.msk [vmem:[#allocation2 + $0x8] sm:$0xff] %vm82, %v305
    // Predicated region
    $region10: #{tpu_custom_call.1} parent=1 // pred_check
      _
    $region11: #{tpu_custom_call.1} parent=1 // pred_check_branch
      %313 = sbr.rel (0) target = $region13
    $region12: #{tpu_custom_call.1} parent=1 // pred_region
      %s315 = ssub.s32 256, 256
      %316 = vsyncadd [#allocation3], %s315
      %s317 = sshll.u32 [#allocation2], 4
      %s318 = int_to_ptr.vmem [resolvable:$true] %s317
      %323 = dma.vmem_to_hbm [thread:$0]  %s318, 256, %s2, [#allocation3], 128, 128, 8
    $region13: #{tpu_custom_call.1} parent=1 // pred_fallthru
      _
    // Predicated region
    $region14: #{tpu_custom_call.1} parent=1 // pred_check
      _
    $region15: #{tpu_custom_call.1} parent=1 // pred_check_branch
      %325 = sbr.rel (0) target = $region17
    $region16: #{tpu_custom_call.1} parent=1 // pred_region
      %326 = dma.done [#allocation3], 256
    $region17: #{tpu_custom_call.1} parent=1 // pred_fallthru
      _
    %327 = vsyncpa [#allocation3], 1

</llo_original>
